<compile_context>
chip_gen: v7x
topology: tpu7x:2x2x1
jax: 0.10.0
libtpu: 0.0.40
codegen_flags: <defaults>
</compile_context>

<pallas_src>
import functools

import jax
import jax.numpy as jnp
from jax.experimental import pallas as pl
from jax.experimental.pallas import tpu as pltpu

_LANE = 128
_MAX_CHUNKS = 64                         # bound on the statically-unrolled inner loop
_PIPE_VMEM_BUDGET = 18 * 1024 * 1024     # double-buffered input-DMA budget (bytes)
_VMEM_LIMIT = 32 * 1024 * 1024           # explicit scoped-VMEM limit (v5e default: 16 MiB)


def _round_up(v, m):
    return ((v + m - 1) // m) * m


def _chunk_for(tile):
    """Largest inner compute-chunk from {1024,512,256,128} that divides tile."""
    for cand in (1024, 512, 256, _LANE):
        if cand <= tile and tile % cand == 0:
            return cand
    return _LANE


def _choose_tiling(hw_eff, c, in_bytes, max_tile_pixels):
    """Pick (tile, chunk, ragged) for the pixel axis.

    The DMA tile is the largest lane-multiple keeping the double-buffered input
    pipeline (native-dtype logits + int32 targets) inside a VMEM budget sized for
    the smallest generation (v7x).  A divisor of hw_eff is preferred (no ragged
    tail -> no per-chunk bounds masking); otherwise the tail is masked in-kernel.
    """
    per_pixel = 2 * (c * in_bytes + 4)          # x2: double-buffered by the pipeline
    cap = min(_PIPE_VMEM_BUDGET // per_pixel, max_tile_pixels, hw_eff)
    cap = max(_LANE, (cap // _LANE) * _LANE)

    if hw_eff <= cap:
        tile, ragged = hw_eff, False
    else:
        groups = hw_eff // _LANE
        best = _LANE
        for k in range(1, cap // _LANE + 1):    # largest lane-multiple divisor <= cap
            if groups % k == 0:
                best = k * _LANE
        if best * 2 >= cap:
            tile, ragged = best, False          # big divisor: ragged-free grid steps
        else:
            tile, ragged = cap, True            # only tiny divisors: mask the tail

    chunk = _chunk_for(tile)
    if tile // chunk > _MAX_CHUNKS:             # bound unrolled-loop code size
        tile = chunk * _MAX_CHUNKS
        ragged = (hw_eff % tile) != 0
        chunk = _chunk_for(tile)
    return tile, chunk, ragged


def _loss_stats_kernel(t_ref, x_ref, acc_ref, *, c, c_pad, chunk, n_chunks,
                       gamma, ignore_index, ragged, valid_hw, tiles_per_split,
                       tile):
    """Accumulates per-lane partial sums of the Dice/Focal statistics.

    Accumulator rows of the resident [rows, 128] slab (rows = 3*c_pad + 8):
      [0         : c)          sum_px softmax(x)*onehot      (dice intersection)
      [c_pad     : c_pad+c)    sum_px softmax(x) (valid px)  (dice denominator)
      [2*c_pad   : 2*c_pad+c)  sum_px onehot                 (dice denominator)
      row 3*c_pad              sum_px focal term
      row 3*c_pad + 1          number of valid pixels
    Precondition (same as the PyTorch module): targets are ignore_index or in [0, C).
    """
    p = pl.program_id(2)

    @pl.when(p == 0)
    def _():
        acc_ref[...] = jnp.zeros_like(acc_ref)

    # Hoisted once per grid step (shared by every chunk; JAX does not CSE iotas).
    cls = jax.lax.broadcasted_iota(jnp.int32, (c, chunk), 0)
    if ragged:
        tile_base = (pl.program_id(0) * tiles_per_split + p) * tile
        lane_iota = jax.lax.broadcasted_iota(jnp.int32, (1, chunk), 1)

    def fold_lanes(v):
        # [r, chunk] -> [r, 128] per-lane partial sums.  chunk/128 <= 8 so a
        # short fold is enough; independent folds per chunk provide the ILP.
        out = v[:, 0:_LANE]
        for j in range(1, chunk // _LANE):
            out = out + v[:, j * _LANE:(j + 1) * _LANE]
        return out

    inter_acc = jnp.zeros((c, _LANE), jnp.float32)
    psum_acc = jnp.zeros((c, _LANE), jnp.float32)
    oh_acc = jnp.zeros((c, _LANE), jnp.float32)
    tail_acc = jnp.zeros((2, _LANE), jnp.float32)

    # Statically-unrolled chunk loop (n_chunks <= _MAX_CHUNKS): decouples the
    # large DMA tile from the compute footprint -- only one set of [c, chunk]
    # f32 slabs is live at a time, so big tiles don't spill.  All lane slices
    # are static and 128-aligned.
    # TODO(synk): for C <= 4, pack two 128-pixel lane-chunks into the unused
    # sublanes so the [c, chunk] VPU ops use all 8 f32 sublanes.
    for ci in range(n_chunks):
        off = ci * chunk
        x = x_ref[0, :, off:off + chunk].astype(jnp.float32)      # [c, chunk]
        t = t_ref[0, :, off:off + chunk]                           # [1, chunk] int32

        if ragged:
            pix = lane_iota + (tile_base + off)
            in_bounds = pix < valid_hw
            x = jnp.where(in_bounds, x, 0.0)       # OOB tail may be garbage/NaN
            valid = jnp.logical_and(t != ignore_index, in_bounds)
        else:
            valid = t != ignore_index
        maskf = valid.astype(jnp.float32)                          # [1, chunk]

        # masked one-hot via sublane class iota (pure VPU compare)
        onehot = (cls == t).astype(jnp.float32) * maskf            # [c, chunk]

        # numerically stable softmax over the small class/sublane axis; exact
        # reciprocal keeps the dice statistics unbiased; the valid mask is folded
        # into the [1, chunk] normalizer (no separate [c, chunk] mask multiply).
        m = jnp.max(x, axis=0, keepdims=True)                      # [1, chunk]
        e = jnp.exp(x - m)
        s = jnp.sum(e, axis=0, keepdims=True)
        pm = e * (pl.reciprocal(s) * maskf)                        # masked softmax

        inter = pm * onehot                                        # [c, chunk]
        # focal pieces: pt is reused from the softmax (no extra exp)
        pt = jnp.sum(inter, axis=0, keepdims=True)                 # [1, chunk]
        logit_t = jnp.sum(x * onehot, axis=0, keepdims=True)       # [1, chunk]
        logpt = jnp.maximum(m + jnp.log(s) - logit_t, 0.0)         # -log p_target
        one_m = jnp.maximum(1.0 - pt, 0.0)
        if gamma == 2.0:
            wgt = one_m * one_m                                    # avoid pow
        elif gamma == 1.0:
            wgt = one_m
        elif gamma == 0.0:
            wgt = jnp.ones_like(one_m)
        else:
            wgt = jnp.power(one_m, gamma)
        focal = wgt * logpt * maskf                                # [1, chunk]

        inter_acc = inter_acc + fold_lanes(inter)
        psum_acc = psum_acc + fold_lanes(pm)
        oh_acc = oh_acc + fold_lanes(onehot)
        tail_acc = tail_acc + fold_lanes(jnp.concatenate([focal, maskf], axis=0))

    def pad_rows(v, r):
        if v.shape[0] == r:
            return v
        return jnp.concatenate(
            [v, jnp.zeros((r - v.shape[0], _LANE), jnp.float32)], axis=0)

    # Single unmasked lane-dense accumulator update per grid step.
    update = jnp.concatenate(
        [pad_rows(inter_acc, c_pad), pad_rows(psum_acc, c_pad),
         pad_rows(oh_acc, c_pad), pad_rows(tail_acc, 8)], axis=0)   # [rows, 128]
    acc_ref[0] += update


def combined_dice_focal_loss(logits, targets, *, alpha=0.8, gamma=2.0, smooth=1.0,
                             ignore_index=-1, max_tile_pixels=16384):
    """logits: [N, C, H, W] float (any float dtype); targets: [N, H, W] int."""
    n, c, h, w = logits.shape
    hw = h * w
    in_bytes = jnp.dtype(logits.dtype).itemsize

    # Free reshape (no transpose): pixels land on the 128-lane axis.
    x = logits.reshape(n, c, hw)                       # native dtype through the DMA
    t = targets.reshape(n, 1, hw).astype(jnp.int32)
    # TODO(synk): ship targets as int16/int8 (C < 128) to shave HBM bytes once the
    # packed narrow-int lowering is validated on all generations.

    hw_eff = _round_up(hw, _LANE)
    if hw_eff != hw:
        # Rare (H*W not lane-aligned): pad once; padded pixels carry ignore_index
        # targets so they are masked out inside the kernel.
        x = jnp.pad(x, ((0, 0), (0, 0), (0, hw_eff - hw)))
        t = jnp.pad(t, ((0, 0), (0, 0), (0, hw_eff - hw)),
                    constant_values=ignore_index)

    tile, chunk, ragged = _choose_tiling(hw_eff, c, in_bytes, max_tile_pixels)
    grid_p = pl.cdiv(hw_eff, tile)

    # v7x has two TensorCores; when the batch axis alone can't feed both, split
    # the pixel range 2-way on an extra "parallel" axis (harmless on v5e/v6e).
    n_split = 2 if (n % 2 == 1 and grid_p % 2 == 0 and grid_p >= 2) else 1
    gpp = grid_p // n_split
    n_chunks = tile // chunk

    c_pad = _round_up(c, 8)
    rows = 3 * c_pad + 8

    kernel = functools.partial(
        _loss_stats_kernel, c=c, c_pad=c_pad, chunk=chunk, n_chunks=n_chunks,
        gamma=float(gamma), ignore_index=int(ignore_index), ragged=ragged,
        valid_hw=hw_eff, tiles_per_split=gpp, tile=tile)

    acc = pl.pallas_call(
        kernel,
        out_shape=jax.ShapeDtypeStruct((n_split * n, rows, _LANE), jnp.float32),
        grid_spec=pltpu.PrefetchScalarGridSpec(
            num_scalar_prefetch=0,
            grid=(n_split, n, gpp),
            in_specs=[
                pl.BlockSpec((1, 1, tile), lambda s, b, p: (b, 0, s * gpp + p)),
                pl.BlockSpec((1, c, tile), lambda s, b, p: (b, 0, s * gpp + p)),
                # TODO(synk): if xprof shows exposed DMA waits on v7x (two cores
                # sharing HBM), add pipeline_mode=pl.Buffered(3) to the logits spec.
            ],
            # one resident lane-dense accumulator slab per (split, batch) pair
            out_specs=pl.BlockSpec((1, rows, _LANE),
                                   lambda s, b, p: (s * n + b, 0, 0)),
        ),
        compiler_params=pltpu.CompilerParams(
            dimension_semantics=("parallel", "parallel", "arbitrary"),
            vmem_limit_bytes=_VMEM_LIMIT),
    )(t, x)

    # Tiny epilogue in plain JAX: combine slabs + 128-lane reduce.
    totals = jnp.sum(acc, axis=(0, 2))                 # (rows,)
    inter = totals[0:c]
    p_sum = totals[c_pad:c_pad + c]
    oh_sum = totals[2 * c_pad:2 * c_pad + c]
    focal_sum = totals[3 * c_pad]
    valid_cnt = totals[3 * c_pad + 1]

    dice_score = (2.0 * inter + smooth) / (p_sum + oh_sum + smooth)
    dice_loss = 1.0 - jnp.mean(dice_score)
    focal_loss = focal_sum / jnp.maximum(valid_cnt, 1.0)   # guard: all pixels ignored
    return alpha * focal_loss + (1.0 - alpha) * dice_loss


def _reference(logits, targets, *, alpha=0.8, gamma=2.0, smooth=1.0, ignore_index=-1):
    """Pure-JAX reference mirroring the PyTorch forward (masked instead of gathered)."""
    n, c, h, w = logits.shape
    x = jnp.transpose(logits, (0, 2, 3, 1)).reshape(-1, c).astype(jnp.float32)
    t = targets.reshape(-1).astype(jnp.int32)
    valid = t != ignore_index
    mask = valid.astype(jnp.float32)[:, None]
    t_safe = jnp.where(valid, t, 0)
    oh = jax.nn.one_hot(t_safe, c, dtype=jnp.float32) * mask
    p = jax.nn.softmax(x, axis=1) * mask
    inter = jnp.sum(p * oh, axis=0)
    denom = jnp.sum(p, axis=0) + jnp.sum(oh, axis=0)
    dice = 1.0 - jnp.mean((2.0 * inter + smooth) / (denom + smooth))
    logp = jax.nn.log_softmax(x, axis=1)
    logpt = -jnp.sum(logp * jax.nn.one_hot(t_safe, c, dtype=jnp.float32),
                     axis=1, keepdims=True)
    pt = jnp.exp(-logpt)
    focal = jnp.sum(((1.0 - pt) ** gamma) * logpt * mask) / jnp.sum(mask)
    return alpha * focal + (1.0 - alpha) * dice


if __name__ == "__main__":
    key = jax.random.PRNGKey(0)
    k1, k2, k3, k4 = jax.random.split(key, 4)

    # Base case: matches the module's typical call (NCHW logits, NHW int targets).
    N, C, H, W = 2, 4, 16, 16
    logits = jax.random.normal(k1, (N, C, H, W), dtype=jnp.float32)
    targets = jax.random.randint(k2, (N, H, W), 0, C, dtype=jnp.int32)
    drop = jax.random.uniform(k3, (N, H, W)) < 0.1        # exercise ignore_index
    targets = jnp.where(drop, -1, targets)

    loss = jax.block_until_ready(combined_dice_focal_loss(logits, targets))
    ref = _reference(logits, targets)
    assert jnp.allclose(loss, ref, rtol=2e-3, atol=1e-5), (loss, ref)

    # bf16 fast path: native-dtype DMA, f32 math in-kernel; compared against the
    # reference on the same bf16-rounded logits (review correctness note).
    logits_bf16 = logits.astype(jnp.bfloat16)
    loss_bf16 = jax.block_until_ready(combined_dice_focal_loss(logits_bf16, targets))
    ref_bf16 = _reference(logits_bf16.astype(jnp.float32), targets)
    assert jnp.allclose(loss_bf16, ref_bf16, rtol=2e-3, atol=1e-5), (loss_bf16, ref_bf16)

    # Multi-tile path: accumulator revisit across pixel tiles, 2-chunk inner loop
    # and the N==1 two-way pixel split (v7x core split; harmless elsewhere).
    lg2 = jax.random.normal(k4, (1, 3, 64, 128), dtype=jnp.float32)
    tg2 = jax.random.randint(k2, (1, 64, 128), 0, 3, dtype=jnp.int32)
    loss2 = jax.block_until_ready(
        combined_dice_focal_loss(lg2, tg2, max_tile_pixels=2048))
    ref2 = _reference(lg2, tg2)
    assert jnp.allclose(loss2, ref2, rtol=2e-3, atol=1e-5), (loss2, ref2)

    # Ragged-tail path: H*W = 17*128 has no useful lane-multiple divisor below the
    # (deliberately small) tile cap, so the last tile is masked in-kernel.
    lg3 = jax.random.normal(k3, (1, 5, 34, 64), dtype=jnp.float32)
    tg3 = jax.random.randint(k1, (1, 34, 64), 0, 5, dtype=jnp.int32)
    loss3 = jax.block_until_ready(
        combined_dice_focal_loss(lg3, tg3, max_tile_pixels=512))
    ref3 = _reference(lg3, tg3)
    assert jnp.allclose(loss3, ref3, rtol=2e-3, atol=1e-5), (loss3, ref3)

    # Non-lane-aligned pixel count: wrapper pads once with ignore_index targets.
    lg4 = jax.random.normal(k2, (2, 3, 10, 10), dtype=jnp.float32)
    tg4 = jax.random.randint(k4, (2, 10, 10), 0, 3, dtype=jnp.int32)
    loss4 = jax.block_until_ready(combined_dice_focal_loss(lg4, tg4))
    ref4 = _reference(lg4, tg4)
    assert jnp.allclose(loss4, ref4, rtol=2e-3, atol=1e-5), (loss4, ref4)

    print("KERNEL_OK")
</pallas_src>

<mosaic_0001>
module attributes {stable_mosaic.version = 11 : i64} {
  func.func @_loss_stats_kernel(%arg0: i32, %arg1: i32, %arg2: i32, %arg3: memref<1x1x256xi32, #tpu.memory_space<vmem>>, %arg4: memref<1x4x256xf32, #tpu.memory_space<vmem>>, %arg5: memref<1x32x128xf32, #tpu.memory_space<vmem>>) attributes {dimension_semantics = [#tpu.dimension_semantics<parallel>, #tpu.dimension_semantics<parallel>, #tpu.dimension_semantics<arbitrary>], iteration_bounds = array<i64: 1, 2, 1>, scalar_prefetch = 0 : i64, scratch_operands = 0 : i64, tpu.core_type = #tpu.core_type<tc>, window_params = [{transform_indices = @transform_0, window_bounds = array<i64: 1, 1, 256>}, {transform_indices = @transform_1, window_bounds = array<i64: 1, 4, 256>}, {transform_indices = @transform_2, window_bounds = array<i64: 1, 32, 128>}]} {
    %c0_i32 = arith.constant 0 : i32
    %0 = arith.cmpi eq, %arg2, %c0_i32 : i32
    %1 = arith.extui %0 : i1 to i32
    %c0_i32_0 = arith.constant 0 : i32
    %2 = arith.cmpi ne, %1, %c0_i32_0 : i32
    scf.if %2 {
      %cst_26 = arith.constant 0.000000e+00 : f32
      %83 = vector.broadcast %cst_26 : f32 to vector<1x32x128xf32>
      %c0_27 = arith.constant 0 : index
      %c0_28 = arith.constant 0 : index
      %c0_29 = arith.constant 0 : index
      %84 = vector.load %arg5[%c0_27, %c0_28, %c0_29] : memref<1x32x128xf32, #tpu.memory_space<vmem>>, vector<1x32x128xf32>
      tpu.vector_store %arg5[%c0_27, %c0_28, %c0_29], %83 {strides = array<i32>} : memref<1x32x128xf32, #tpu.memory_space<vmem>>, vector<1x32x128xf32>,
    } else {
    }
    %3 = tpu.iota {dimensions = array<i32: 0>} : vector<4x256xi32>
    %cst = arith.constant 0.000000e+00 : f32
    %4 = vector.broadcast %cst : f32 to vector<4x128xf32>
    %cst_1 = arith.constant 0.000000e+00 : f32
    %5 = vector.broadcast %cst_1 : f32 to vector<4x128xf32>
    %cst_2 = arith.constant 0.000000e+00 : f32
    %6 = vector.broadcast %cst_2 : f32 to vector<4x128xf32>
    %cst_3 = arith.constant 0.000000e+00 : f32
    %7 = vector.broadcast %cst_3 : f32 to vector<2x128xf32>
    %c0 = arith.constant 0 : index
    %c0_4 = arith.constant 0 : index
    %c0_5 = arith.constant 0 : index
    %8 = vector.load %arg4[%c0, %c0_4, %c0_5] : memref<1x4x256xf32, #tpu.memory_space<vmem>>, vector<1x4x256xf32>
    %9 = vector.shape_cast %8 : vector<1x4x256xf32> to vector<4x256xf32>
    %c0_6 = arith.constant 0 : index
    %c0_7 = arith.constant 0 : index
    %c0_8 = arith.constant 0 : index
    %10 = vector.load %arg3[%c0_6, %c0_7, %c0_8] : memref<1x1x256xi32, #tpu.memory_space<vmem>>, vector<1x1x256xi32>
    %11 = vector.shape_cast %10 : vector<1x1x256xi32> to vector<1x256xi32>
    %c-1_i32 = arith.constant -1 : i32
    %12 = vector.broadcast %c-1_i32 : i32 to vector<1x256xi32>
    %13 = arith.cmpi ne, %11, %12 : vector<1x256xi32>
    %14 = arith.extui %13 : vector<1x256xi1> to vector<1x256xi32>
    %15 = arith.sitofp %14 : vector<1x256xi32> to vector<1x256xf32>
    %16 = vector.broadcast %11 : vector<1x256xi32> to vector<4x256xi32>
    %17 = arith.cmpi eq, %3, %16 : vector<4x256xi32>
    %18 = arith.extui %17 : vector<4x256xi1> to vector<4x256xi32>
    %19 = arith.sitofp %18 : vector<4x256xi32> to vector<4x256xf32>
    %20 = vector.broadcast %15 : vector<1x256xf32> to vector<4x256xf32>
    %21 = arith.mulf %19, %20 : vector<4x256xf32>
    %cst_9 = arith.constant dense<0xFF800000> : vector<256xf32>
    %22 = vector.multi_reduction <maximumf>, %9, %cst_9 [0] : vector<4x256xf32> to vector<256xf32>
    %23 = vector.shape_cast %22 : vector<256xf32> to vector<1x256xf32>
    %24 = vector.broadcast %23 : vector<1x256xf32> to vector<4x256xf32>
    %25 = arith.subf %9, %24 : vector<4x256xf32>
    %26 = math.exp %25 : vector<4x256xf32>
    %cst_10 = arith.constant dense<0.000000e+00> : vector<256xf32>
    %27 = vector.multi_reduction <add>, %26, %cst_10 [0] : vector<4x256xf32> to vector<256xf32>
    %28 = vector.shape_cast %27 : vector<256xf32> to vector<1x256xf32>
    %29 = tpu.reciprocal %28 : vector<1x256xf32> -> vector<1x256xf32>
    %30 = arith.mulf %29, %15 : vector<1x256xf32>
    %31 = vector.broadcast %30 : vector<1x256xf32> to vector<4x256xf32>
    %32 = arith.mulf %26, %31 : vector<4x256xf32>
    %33 = arith.mulf %32, %21 : vector<4x256xf32>
    %cst_11 = arith.constant dense<0.000000e+00> : vector<256xf32>
    %34 = vector.multi_reduction <add>, %33, %cst_11 [0] : vector<4x256xf32> to vector<256xf32>
    %35 = vector.shape_cast %34 : vector<256xf32> to vector<1x256xf32>
    %36 = arith.mulf %9, %21 : vector<4x256xf32>
    %cst_12 = arith.constant dense<0.000000e+00> : vector<256xf32>
    %37 = vector.multi_reduction <add>, %36, %cst_12 [0] : vector<4x256xf32> to vector<256xf32>
    %38 = vector.shape_cast %37 : vector<256xf32> to vector<1x256xf32>
    %39 = math.log %28 : vector<1x256xf32>
    %40 = arith.addf %23, %39 : vector<1x256xf32>
    %41 = arith.subf %40, %38 : vector<1x256xf32>
    %cst_13 = arith.constant 0.000000e+00 : f32
    %42 = vector.broadcast %cst_13 : f32 to vector<1x256xf32>
    %43 = arith.maximumf %41, %42 : vector<1x256xf32>
    %cst_14 = arith.constant 1.000000e+00 : f32
    %44 = vector.broadcast %cst_14 : f32 to vector<1x256xf32>
    %45 = arith.subf %44, %35 : vector<1x256xf32>
    %cst_15 = arith.constant 0.000000e+00 : f32
    %46 = vector.broadcast %cst_15 : f32 to vector<1x256xf32>
    %47 = arith.maximumf %45, %46 : vector<1x256xf32>
    %48 = arith.mulf %47, %47 : vector<1x256xf32>
    %49 = arith.mulf %48, %43 : vector<1x256xf32>
    %50 = arith.mulf %49, %15 : vector<1x256xf32>
    %51 = vector.extract_strided_slice %33 {offsets = [0, 0], sizes = [4, 128], strides = [1, 1]} : vector<4x256xf32> to vector<4x128xf32>
    %52 = vector.extract_strided_slice %33 {offsets = [0, 128], sizes = [4, 128], strides = [1, 1]} : vector<4x256xf32> to vector<4x128xf32>
    %53 = arith.addf %51, %52 : vector<4x128xf32>
    %54 = arith.addf %4, %53 : vector<4x128xf32>
    %55 = vector.extract_strided_slice %32 {offsets = [0, 0], sizes = [4, 128], strides = [1, 1]} : vector<4x256xf32> to vector<4x128xf32>
    %56 = vector.extract_strided_slice %32 {offsets = [0, 128], sizes = [4, 128], strides = [1, 1]} : vector<4x256xf32> to vector<4x128xf32>
    %57 = arith.addf %55, %56 : vector<4x128xf32>
    %58 = arith.addf %5, %57 : vector<4x128xf32>
    %59 = vector.extract_strided_slice %21 {offsets = [0, 0], sizes = [4, 128], strides = [1, 1]} : vector<4x256xf32> to vector<4x128xf32>
    %60 = vector.extract_strided_slice %21 {offsets = [0, 128], sizes = [4, 128], strides = [1, 1]} : vector<4x256xf32> to vector<4x128xf32>
    %61 = arith.addf %59, %60 : vector<4x128xf32>
    %62 = arith.addf %6, %61 : vector<4x128xf32>
    %63 = tpu.concatenate %50, %15 in 0 : vector<1x256xf32>, vector<1x256xf32> -> vector<2x256xf32>
    %64 = vector.extract_strided_slice %63 {offsets = [0, 0], sizes = [2, 128], strides = [1, 1]} : vector<2x256xf32> to vector<2x128xf32>
    %65 = vector.extract_strided_slice %63 {offsets = [0, 128], sizes = [2, 128], strides = [1, 1]} : vector<2x256xf32> to vector<2x128xf32>
    %66 = arith.addf %64, %65 : vector<2x128xf32>
    %67 = arith.addf %7, %66 : vector<2x128xf32>
    %cst_16 = arith.constant 0.000000e+00 : f32
    %68 = vector.broadcast %cst_16 : f32 to vector<4x128xf32>
    %69 = tpu.concatenate %54, %68 in 0 : vector<4x128xf32>, vector<4x128xf32> -> vector<8x128xf32>
    %cst_17 = arith.constant 0.000000e+00 : f32
    %70 = vector.broadcast %cst_17 : f32 to vector<4x128xf32>
    %71 = tpu.concatenate %58, %70 in 0 : vector<4x128xf32>, vector<4x128xf32> -> vector<8x128xf32>
    %cst_18 = arith.constant 0.000000e+00 : f32
    %72 = vector.broadcast %cst_18 : f32 to vector<4x128xf32>
    %73 = tpu.concatenate %62, %72 in 0 : vector<4x128xf32>, vector<4x128xf32> -> vector<8x128xf32>
    %cst_19 = arith.constant 0.000000e+00 : f32
    %74 = vector.broadcast %cst_19 : f32 to vector<6x128xf32>
    %75 = tpu.concatenate %67, %74 in 0 : vector<2x128xf32>, vector<6x128xf32> -> vector<8x128xf32>
    %76 = tpu.concatenate %69, %71, %73, %75 in 0 : vector<8x128xf32>, vector<8x128xf32>, vector<8x128xf32>, vector<8x128xf32> -> vector<32x128xf32>
    %c0_20 = arith.constant 0 : index
    %c0_21 = arith.constant 0 : index
    %c0_22 = arith.constant 0 : index
    %77 = vector.load %arg5[%c0_20, %c0_21, %c0_22] : memref<1x32x128xf32, #tpu.memory_space<vmem>>, vector<1x32x128xf32>
    %78 = vector.shape_cast %77 : vector<1x32x128xf32> to vector<32x128xf32>
    %79 = arith.addf %78, %76 : vector<32x128xf32>
    %c0_23 = arith.constant 0 : index
    %c0_24 = arith.constant 0 : index
    %c0_25 = arith.constant 0 : index
    %80 = vector.load %arg5[%c0_23, %c0_24, %c0_25] : memref<1x32x128xf32, #tpu.memory_space<vmem>>, vector<1x32x128xf32>
    %81 = vector.shape_cast %80 : vector<1x32x128xf32> to vector<32x128xf32>
    %82 = vector.shape_cast %79 : vector<32x128xf32> to vector<1x32x128xf32>
    tpu.vector_store %arg5[%c0_23, %c0_24, %c0_25], %82 {strides = array<i32>} : memref<1x32x128xf32, #tpu.memory_space<vmem>>, vector<1x32x128xf32>,
    return
  }
  func.func @transform_0(%arg0: i32, %arg1: i32, %arg2: i32) -> (i32, i32, i32) {
    %c1_i32 = arith.constant 1 : i32
    %0 = arith.muli %arg0, %c1_i32 : i32
    %1 = arith.addi %0, %arg2 : i32
    %c0_i32 = arith.constant 0 : i32
    %c0_i32_0 = arith.constant 0 : i32
    return %arg1, %c0_i32, %1 : i32, i32, i32
  }
  func.func @transform_1(%arg0: i32, %arg1: i32, %arg2: i32) -> (i32, i32, i32) {
    %c1_i32 = arith.constant 1 : i32
    %0 = arith.muli %arg0, %c1_i32 : i32
    %1 = arith.addi %0, %arg2 : i32
    %c0_i32 = arith.constant 0 : i32
    %c0_i32_0 = arith.constant 0 : i32
    return %arg1, %c0_i32, %1 : i32, i32, i32
  }
  func.func @transform_2(%arg0: i32, %arg1: i32, %arg2: i32) -> (i32, i32, i32) {
    %c2_i32 = arith.constant 2 : i32
    %0 = arith.muli %arg0, %c2_i32 : i32
    %1 = arith.addi %0, %arg1 : i32
    %c0_i32 = arith.constant 0 : i32
    %c0_i32_0 = arith.constant 0 : i32
    %c0_i32_1 = arith.constant 0 : i32
    return %1, %c0_i32, %c0_i32_0 : i32, i32, i32
  }
}

</mosaic_0001>

<llo_original>
// kernel: tpu_custom_call.1
$region0: #{tpu_custom_call.1}
  #allocation0 [shape = 'u32[]', space=smem, size = 0x4, offset = 0x4, fixed_abs, tag = 'smem constant byte address 0x4 - core index']
  #allocation1 [shape = 'u32[144,128]{1,0:T(1,128)}', space=vmem, size = 0x12000, scoped, tag = 'internal scratch']
  %s0 = inlined_call_operand.hbm [shape: s32[2,1,256], index: 0, kind: input, shape index: {}]
  %s1 = inlined_call_operand.hbm [shape: f32[2,4,256], index: 1, kind: input, shape index: {}]
  %s2 = inlined_call_operand.hbm [shape: f32[2,32,128], index: 2, kind: output, shape index: {}]
  %s3 = sld [smem:[#allocation0]]
  $region53: #{tpu_custom_call.1} parent=0
    _
  %s5 = ssub.s32 1, %s3
  %s6 = scalar_select 0, %s5, %s3
  $region1: #{tpu_custom_call.1} parent=0
    #allocation2 [shape = 'u8[2048]{0}', space=vmem, size = 0x800, scoped, tag = 'input window, operand 0']
    #allocation3 [shape = 's32[2]{0}', space=sflag, size = 0x8, scoped, tag = 'scoped memory for tpu_custom_call.1']
    #allocation4 [shape = 's32[2]{0}', space=sflag, size = 0x8, scoped, tag = 'scoped memory for tpu_custom_call.1']
    #allocation5 [shape = 'u8[8192]{0}', space=vmem, size = 0x2000, scoped, tag = 'input window, operand 1']
    #allocation6 [shape = 's32[2]{0}', space=sflag, size = 0x8, scoped, tag = 'scoped memory for tpu_custom_call.1']
    #allocation7 [shape = 'u8[32768]{0}', space=vmem, size = 0x8000, scoped, tag = 'output window, operand 0']
    %7 = vsyncpa [#allocation3], 0
    %s8 = scalar_lea.sflag [#allocation3], 1
    %9 = vsyncpa %s8, 0
    %10 = vsyncpa [#allocation6], 0
    %s11 = scalar_lea.sflag [#allocation6], 1
    %12 = vsyncpa %s11, 0
    %13 = vsyncpa [#allocation4], 0
    %s14 = scalar_lea.sflag [#allocation4], 1
    %15 = vsyncpa %s14, 0
    loop: start=0, step=1, limit=4
    $region2: #{tpu_custom_call.1} parent=1 // loop_pre_header
      _
    $region3: #{tpu_custom_call.1} parent=1 // loop_header
      %s17 = sphi 0, %s21
      %p18 = scmp.ge.s32.totalorder %s17, 4
      %s24 = sphi 0, %s43
      %s25 = sphi 0, %s39
      %s26 = sphi 0, %s35
      %s27 = sphi 0, %s24
      %s28 = sphi 0, %s25
      %s29 = sphi 0, %s26
      %s30 = sphi 0, %s27
      %s31 = sphi 0, %s28
      %s32 = sphi 0, %s29
      %s50 = sphi 0, %s52
      %s53 = sphi 0, %s50
      %s54 = sphi 0, %s53
      %s70 = sphi 0, %s54
      %s80 = sphi 0, %s82
      %s83 = sphi 0, %s80
      %s84 = sphi 0, %s83
      %s100 = sphi 0, %s84
      %s110 = sphi 0, %s112
      %s113 = sphi 0, %s110
      %s114 = sphi 0, %s113
      %s130 = sphi 0, %s114
    $region4: #{tpu_custom_call.1} parent=1 // loop_header_branch
      %20 = sbr.rel (%p18) target = $region8
    $region5: #{tpu_custom_call.1} parent=1 // loop_body
      %s22 = ssub.s32 %s17, 1
      %s23 = ssub.s32 %s17, 2
      %s33 = sadd.s32 1, %s26
      %p34 = scmp.ge.s32.totalorder %s33, 1
      %s35 = scalar_select %p34, 0, %s33
      %s36 = sadd.s32 1, %s25
      %s37 = scalar_select %p34, %s36, %s25
      %p38 = scmp.ge.s32.totalorder %s37, 2
      %s39 = scalar_select %p38, 0, %s37
      %s40 = sadd.s32 1, %s24
      %s41 = scalar_select %p38, %s40, %s24
      %p42 = scmp.ge.s32.totalorder %s41, 1
      %s43 = scalar_select %p42, 0, %s41
      %s44 = sadd.s32 %s24, %s26
      %s45 = sadd.s32 %s43, %s35
      %s46 = ssub.s32 %s25, %s39
      %s47 = ssub.s32 %s44, %s45
      %s48 = sor.u32 %s46, %s47
      %p49 = scmp.eq.s32.totalorder %s48, 0
      %s51 = sadd.s32 %s50, 1
      %s52 = scalar_select %p49, %s50, %s51
      %p55 = pneg %p49
      %p56 = scmp.eq.s32.totalorder %s17, 1
      %p57 = por %p55, %p56
      %p58 = scmp.ne.s32.totalorder %s50, %s53
      %p59 = scmp.eq.s32.totalorder %s17, 0
      %p60 = por %p58, %p59
      %p61 = scmp.ne.s32.totalorder %s50, %s53
      %p62 = scmp.eq.s32.totalorder %s22, 1
      %p63 = por %p61, %p62
      %p64 = scmp.ne.s32.totalorder %s53, %s54
      %p65 = scmp.eq.s32.totalorder %s22, 0
      %p66 = por %p64, %p65
      %p67 = scmp.ne.s32.totalorder %s53, %s54
      %p68 = scmp.eq.s32.totalorder %s23, 1
      %p69 = por %p67, %p68
      %p71 = scmp.ne.s32.totalorder %s54, %s70
      %p72 = scmp.eq.s32.totalorder %s23, 0
      %p73 = por %p71, %p72
      %s74 = sadd.s32 %s24, %s26
      %s75 = sadd.s32 %s43, %s35
      %s76 = ssub.s32 %s25, %s39
      %s77 = ssub.s32 %s74, %s75
      %s78 = sor.u32 %s76, %s77
      %p79 = scmp.eq.s32.totalorder %s78, 0
      %s81 = sadd.s32 %s80, 1
      %s82 = scalar_select %p79, %s80, %s81
      %p85 = pneg %p79
      %p86 = scmp.eq.s32.totalorder %s17, 1
      %p87 = por %p85, %p86
      %p88 = scmp.ne.s32.totalorder %s80, %s83
      %p89 = scmp.eq.s32.totalorder %s17, 0
      %p90 = por %p88, %p89
      %p91 = scmp.ne.s32.totalorder %s80, %s83
      %p92 = scmp.eq.s32.totalorder %s22, 1
      %p93 = por %p91, %p92
      %p94 = scmp.ne.s32.totalorder %s83, %s84
      %p95 = scmp.eq.s32.totalorder %s22, 0
      %p96 = por %p94, %p95
      %p97 = scmp.ne.s32.totalorder %s83, %s84
      %p98 = scmp.eq.s32.totalorder %s23, 1
      %p99 = por %p97, %p98
      %p101 = scmp.ne.s32.totalorder %s84, %s100
      %p102 = scmp.eq.s32.totalorder %s23, 0
      %p103 = por %p101, %p102
      %s104 = smul.u32 %s24, 2
      %s105 = sadd.s32 %s104, %s25
      %s106 = smul.u32 %s43, 2
      %s107 = sadd.s32 %s106, %s39
      %s108 = ssub.s32 %s105, %s107
      %p109 = scmp.eq.s32.totalorder %s108, 0
      %s111 = sadd.s32 %s110, 1
      %s112 = scalar_select %p109, %s110, %s111
      %p115 = pneg %p109
      %p116 = scmp.eq.s32.totalorder %s17, 1
      %p117 = por %p115, %p116
      %p118 = scmp.ne.s32.totalorder %s110, %s113
      %p119 = scmp.eq.s32.totalorder %s17, 0
      %p120 = por %p118, %p119
      %p121 = scmp.ne.s32.totalorder %s110, %s113
      %p122 = scmp.eq.s32.totalorder %s22, 1
      %p123 = por %p121, %p122
      %p124 = scmp.ne.s32.totalorder %s113, %s114
      %p125 = scmp.eq.s32.totalorder %s22, 0
      %p126 = por %p124, %p125
      %p127 = scmp.ne.s32.totalorder %s113, %s114
      %p128 = scmp.eq.s32.totalorder %s23, 1
      %p129 = por %p127, %p128
      %p131 = scmp.ne.s32.totalorder %s114, %s130
      %p132 = scmp.eq.s32.totalorder %s23, 0
      %p133 = por %p131, %p132
      %p134 = scmp.le.s32.totalorder 1, %s17
      %p135 = scmp.lt.s32.totalorder %s17, 3
      %p136 = pnand %p134, %p135
      %p137 = pneg %p136
      // Predicated region
      $region9: #{tpu_custom_call.1} parent=5 // pred_check
        _
      $region10: #{tpu_custom_call.1} parent=5 // pred_check_branch
        %139 = sbr.rel (%p136) target = $region12
      $region11: #{tpu_custom_call.1} parent=5 // pred_region
        %s140 = ssub.s32 %s17, 1
      $region12: #{tpu_custom_call.1} parent=5 // pred_fallthru
        _
      %p141 = scmp.lt.s32.totalorder %s17, 2
      // Predicated region
      $region13: #{tpu_custom_call.1} parent=5 // pred_check
        %p142 = pneg %p141
      $region14: #{tpu_custom_call.1} parent=5 // pred_check_branch
        %144 = sbr.rel (%p142) target = $region16
      $region15: #{tpu_custom_call.1} parent=5 // pred_region
        // Predicated region
        $region17: #{tpu_custom_call.1} parent=15 // pred_check
          %p145 = pneg %p60
        $region18: #{tpu_custom_call.1} parent=15 // pred_check_branch
          %147 = sbr.rel (%p145) target = $region20
        $region19: #{tpu_custom_call.1} parent=15 // pred_region
          %s148 = sand.u32 %s50, 1
          %s149 = scalar_lea.sflag [#allocation3], %s148
          %s150 = sand.u32 %s50, 1
          %s151 = smul.addr %s150, 2
          %s152 = scalar_lea.vmem [#allocation2], %s151
          %s153 = sadd.s32 %s24, %s26
          %s154 = smul.u32 2, %s153
          %s156 = ssub.s32 32, 32
          %157 = vsyncadd %s149, %s156
          %s158 = smul.addr %s25, 2
          %s159 = sadd.s32 %s154, %s158
          %s160 = smul.addr %s159, 16
          %s161 = scalar_lea.hbm %s0, %s160
          %s163 = sshll.u32 %s152, 4
          %s164 = int_to_ptr.vmem [resolvable:$true] %s163
          %166 = dma.hbm_to_vmem [thread:$0]  %s161, 32, %s164, %s149
        $region20: #{tpu_custom_call.1} parent=15 // pred_fallthru
          _
        // Predicated region
        $region21: #{tpu_custom_call.1} parent=15 // pred_check
          %p167 = pneg %p90
        $region22: #{tpu_custom_call.1} parent=15 // pred_check_branch
          %169 = sbr.rel (%p167) target = $region24
        $region23: #{tpu_custom_call.1} parent=15 // pred_region
          %s170 = sand.u32 %s80, 1
          %s171 = scalar_lea.sflag [#allocation6], %s170
          %s172 = sand.u32 %s80, 1
          %s173 = smul.addr %s172, 8
          %s174 = scalar_lea.vmem [#allocation5], %s173
          %s175 = sadd.s32 %s24, %s26
          %s176 = smul.u32 2, %s175
          %s178 = ssub.s32 128, 128
          %179 = vsyncadd %s171, %s178
          %s180 = smul.addr %s25, 2
          %s181 = sadd.s32 %s176, %s180
          %s182 = smul.addr %s181, 64
          %s183 = scalar_lea.hbm %s1, %s182
          %s185 = sshll.u32 %s174, 4
          %s186 = int_to_ptr.vmem [resolvable:$true] %s185
          %188 = dma.hbm_to_vmem [thread:$0]  %s183, 128, %s186, %s171
        $region24: #{tpu_custom_call.1} parent=15 // pred_fallthru
          _
      $region16: #{tpu_custom_call.1} parent=5 // pred_fallthru
        _
      %p189 = scmp.le.s32.totalorder 1, %s17
      %p190 = scmp.lt.s32.totalorder %s17, 3
      %p191 = pnand %p189, %p190
      %p192 = pneg %p191
      // Predicated region
      $region25: #{tpu_custom_call.1} parent=5 // pred_check
        _
      $region26: #{tpu_custom_call.1} parent=5 // pred_check_branch
        %194 = sbr.rel (%p191) target = $region28
      $region27: #{tpu_custom_call.1} parent=5 // pred_region
        %s195 = ssub.s32 %s17, 1
        %s196 = sand.u32 %s53, 1
        %s197 = scalar_lea.sflag [#allocation3], %s196
        %s198 = sand.u32 %s53, 1
        %s199 = smul.addr %s198, 2
        %s200 = scalar_lea.vmem [#allocation2], %s199
        // Predicated region
        $region29: #{tpu_custom_call.1} parent=27 // pred_check
          %p201 = pneg %p66
        $region30: #{tpu_custom_call.1} parent=27 // pred_check_branch
          %203 = sbr.rel (%p201) target = $region32
        $region31: #{tpu_custom_call.1} parent=27 // pred_region
          %204 = dma.done %s197, 32
        $region32: #{tpu_custom_call.1} parent=27 // pred_fallthru
          _
        %s205 = sand.u32 %s83, 1
        %s206 = scalar_lea.sflag [#allocation6], %s205
        %s207 = sand.u32 %s83, 1
        %s208 = smul.addr %s207, 8
        %s209 = scalar_lea.vmem [#allocation5], %s208
        // Predicated region
        $region33: #{tpu_custom_call.1} parent=27 // pred_check
          %p210 = pneg %p96
        $region34: #{tpu_custom_call.1} parent=27 // pred_check_branch
          %212 = sbr.rel (%p210) target = $region36
        $region35: #{tpu_custom_call.1} parent=27 // pred_region
          %213 = dma.done %s206, 128
        $region36: #{tpu_custom_call.1} parent=27 // pred_fallthru
          _
        %s214 = sand.u32 %s53, 1
        %s215 = scalar_lea.sflag [#allocation3], %s214
        %s216 = sand.u32 %s53, 1
        %s217 = smul.addr %s216, 2
        %s218 = scalar_lea.vmem [#allocation2], %s217
        %p219 = pneg %p66
        %p220 = pneg %p63
        %s221 = sand.u32 %s83, 1
        %s222 = scalar_lea.sflag [#allocation6], %s221
        %s223 = sand.u32 %s83, 1
        %s224 = smul.addr %s223, 8
        %s225 = scalar_lea.vmem [#allocation5], %s224
        %p226 = pneg %p96
        %p227 = pneg %p93
        %p228 = pneg %p126
        %p229 = pneg %p123
        %s230 = sand.u32 %s113, 1
        %s231 = scalar_lea.sflag [#allocation4], %s230
        %s232 = sand.u32 %s113, 1
        %s233 = smul.addr %s232, 32
        %s234 = scalar_lea.vmem [#allocation7], %s233
        %s235 = sadd.s32 %s27, %s29
        %s236 = smul.u32 2, %s235
        %s237 = sadd.s32 %s27, %s29
        %s238 = smul.u32 2, %s237
        %s239 = smul.u32 %s27, 2
        %s240 = sadd.s32 %s239, %s28
        %p241 = scmp.eq.s32.totalorder %s29, 0
        // Predicated region
        $region37: #{tpu_custom_call.1} parent=27 // pred_check
          %p242 = pneg %p241
        $region38: #{tpu_custom_call.1} parent=27 // pred_check_branch
          %244 = sbr.rel (%p242) target = $region40
        $region39: #{tpu_custom_call.1} parent=27 // pred_region
          %245 = vst [vmem:[%s234] sm:$0xff] 0.0
          %246 = vst [vmem:[%s234 + $0x8] sm:$0xff] 0.0
          %247 = vst [vmem:[%s234 + $0x10] sm:$0xff] 0.0
          %248 = vst [vmem:[%s234 + $0x18] sm:$0xff] 0.0
        $region40: #{tpu_custom_call.1} parent=27 // pred_fallthru
          _
        %v249 = vlaneseq
        %v250 = vshrl.u32 %v249, 7
        %v251 = vld [vmem:[%s209] sm:$0xff]
        %v252 = vld [vmem:[%s200] sm:$0x3]
        %vm253 = vcmp.ne.s32.totalorder %v252, 4294967295
        %v254 = vsel %vm253, 1, 0
        %v255 = vcvt.s32.f32 %v254
        %v256 = vlaneseq
        %v257 = vshrl.u32 %v256, 7
        %v258 = vsub.s32 0, %v257
        %v259 = vrot.slane %v252, %v258
        %v260 = vlaneseq
        %v261 = vshrl.u32 %v260, 7
        %v262 = vsub.s32 1, %v261
        %v263 = vrot.slane %v252, %v262
        %vm264 = vcmp.eq.s32.totalorder %v250, %v259
        %vm265 = vcmp.eq.s32.totalorder %v250, %v263
        %v266 = vsel %vm264, 1, 0
        %v267 = vsel %vm265, 1, 0
        %v268 = vcvt.s32.f32 %v266
        %v269 = vcvt.s32.f32 %v267
        %v271 = vlaneseq
        %v272 = vshrl.u32 %v271, 7
        %v273 = vsub.s32 0, %v272
        %v274 = vrot.slane %v255, %v273
        %v275 = vlaneseq
        %v276 = vshrl.u32 %v275, 7
        %v277 = vsub.s32 1, %v276
        %v278 = vrot.slane %v255, %v277
        %v281 = vmul.f32 %v268, %v274
        %v282 = vmul.f32 %v269, %v278
        %v284 = vcombine.high %v251, %v251
        %vm286 = vcmask 1043456
        %v287 = vsel %vm286, %v251, -inf
        %v288 = vrot.slane %v287, 4
        %v289 = vmax.f32 %v287, %v288
        %v290 = vrot.slane %v289, 2
        %v291 = vmax.f32 %v289, %v290
        %v292 = vrot.slane %v291, 1
        %v293 = vmax.f32 %v291, %v292
        %v294 = vsel %vm286, %v284, -inf
        %v295 = vrot.slane %v294, 4
        %v296 = vmax.f32 %v294, %v295
        %v297 = vrot.slane %v296, 2
        %v298 = vmax.f32 %v296, %v297
        %v299 = vrot.slane %v298, 1
        %v300 = vmax.f32 %v298, %v299
        %v303 = vcombine.low %v293, %v300
        %v305 = vsub.f32 %v251, %v303
        %v306 = vmul.f32 %v305, 1.442695
        %v307 = vpow.pop %v306
        %v309 = vcombine.high %v307, %v307
        %v311 = vsel %vm286, %v307, 0.0
        %v312 = vrot.slane %v311, 4
        %v313 = vadd.f32 %v311, %v312
        %v314 = vrot.slane %v313, 2
        %v315 = vadd.f32 %v313, %v314
        %v316 = vrot.slane %v315, 1
        %v317 = vadd.f32 %v315, %v316
        %v318 = vsel %vm286, %v309, 0.0
        %v319 = vrot.slane %v318, 4
        %v320 = vadd.f32 %v318, %v319
        %v321 = vrot.slane %v320, 2
        %v322 = vadd.f32 %v320, %v321
        %v323 = vrot.slane %v322, 1
        %v324 = vadd.f32 %v322, %v323
        %v325 = vrcp.pop %v317
        %v326 = vrcp.pop %v324
        %v327 = vmul.f32 %v325, %v274
        %v328 = vmul.f32 %v326, %v278
        %v329 = vlaneseq
        %v330 = vshrl.u32 %v329, 7
        %v331 = vsub.s32 0, %v330
        %v332 = vrot.slane %v327, %v331
        %v333 = vlaneseq
        %v334 = vshrl.u32 %v333, 7
        %v335 = vsub.s32 0, %v334
        %v336 = vrot.slane %v328, %v335
        %v339 = vcombine.low %v332, %v336
        %v341 = vmul.f32 %v307, %v339
        %v344 = vcombine.low %v281, %v282
        %v346 = vmul.f32 %v341, %v344
        %v348 = vcombine.high %v346, %v346
        %v350 = vsel %vm286, %v346, 0.0
        %v351 = vrot.slane %v350, 4
        %v352 = vadd.f32 %v350, %v351
        %v353 = vrot.slane %v352, 2
        %v354 = vadd.f32 %v352, %v353
        %v355 = vrot.slane %v354, 1
        %v356 = vadd.f32 %v354, %v355
        %v357 = vsel %vm286, %v348, 0.0
        %v358 = vrot.slane %v357, 4
        %v359 = vadd.f32 %v357, %v358
        %v360 = vrot.slane %v359, 2
        %v361 = vadd.f32 %v359, %v360
        %v362 = vrot.slane %v361, 1
        %v363 = vadd.f32 %v361, %v362
        %v364 = vmul.f32 %v251, %v344
        %v366 = vcombine.high %v364, %v364
        %v368 = vsel %vm286, %v364, 0.0
        %v369 = vrot.slane %v368, 4
        %v370 = vadd.f32 %v368, %v369
        %v371 = vrot.slane %v370, 2
        %v372 = vadd.f32 %v370, %v371
        %v373 = vrot.slane %v372, 1
        %v374 = vadd.f32 %v372, %v373
        %v375 = vsel %vm286, %v366, 0.0
        %v376 = vrot.slane %v375, 4
        %v377 = vadd.f32 %v375, %v376
        %v378 = vrot.slane %v377, 2
        %v379 = vadd.f32 %v377, %v378
        %v380 = vrot.slane %v379, 1
        %v381 = vadd.f32 %v379, %v380
        %v382 = vlog2.pop %v317
        %v383 = vmul.f32 %v382, 0.6931472
        %v384 = vlog2.pop %v324
        %v385 = vmul.f32 %v384, 0.6931472
        %v386 = vadd.f32 %v293, %v383
        %v387 = vadd.f32 %v300, %v385
        %v388 = vsub.f32 %v386, %v374
        %v389 = vsub.f32 %v387, %v381
        %v390 = vmax.f32 %v388, 0.0
        %v391 = vmax.f32 %v389, 0.0
        %v392 = vsub.f32 1.0, %v356
        %v393 = vsub.f32 1.0, %v363
        %v394 = vmax.f32 %v392, 0.0
        %v395 = vmax.f32 %v393, 0.0
        %v396 = vmul.f32 %v394, %v394
        %v397 = vmul.f32 %v395, %v395
        %v398 = vmul.f32 %v396, %v390
        %v399 = vmul.f32 %v397, %v391
        %v400 = vmul.f32 %v398, %v274
        %v401 = vmul.f32 %v399, %v278
        %v402 = vrot.slane %v346, 4
        %v404 = vadd.f32 %v346, %v402
        %v405 = vadd.f32 %v404, 0.0
        %v407 = vrot.slane %v341, 4
        %v409 = vadd.f32 %v341, %v407
        %v410 = vadd.f32 %v409, 0.0
        %v411 = vadd.f32 %v281, %v282
        %v412 = vadd.f32 %v411, 0.0
        %vm413 = vcmask 1040384
        %v414 = vsel %vm413, %v400, %v274
        %v415 = vsel %vm413, %v401, %v278
        %v416 = vadd.f32 %v414, %v415
        %v417 = vadd.f32 %v416, 0.0
        %v418 = vsel %vm286, %v405, 0.0
        %v419 = vsel %vm286, %v410, 0.0
        %v420 = vsel %vm286, %v412, 0.0
        %vm421 = vcmask 1041408
        %v422 = vsel %vm421, %v417, 0.0
        %v423 = vld [vmem:[%s234] sm:$0xff]
        %v424 = vld [vmem:[%s234 + $0x8] sm:$0xff]
        %v425 = vld [vmem:[%s234 + $0x10] sm:$0xff]
        %v426 = vld [vmem:[%s234 + $0x18] sm:$0xff]
        %v427 = vadd.f32 %v423, %v418
        %v428 = vadd.f32 %v424, %v419
        %v429 = vadd.f32 %v425, %v420
        %v430 = vadd.f32 %v426, %v422
        %431 = vst [vmem:[%s234] sm:$0xff] %v427
        %432 = vst [vmem:[%s234 + $0x8] sm:$0xff] %v428
        %433 = vst [vmem:[%s234 + $0x10] sm:$0xff] %v429
        %434 = vst [vmem:[%s234 + $0x18] sm:$0xff] %v430
        %s435 = sand.u32 %s113, 1
        %s436 = scalar_lea.sflag [#allocation4], %s435
        %s437 = sand.u32 %s113, 1
        %s438 = smul.addr %s437, 32
        %s439 = scalar_lea.vmem [#allocation7], %s438
        // Predicated region
        $region41: #{tpu_custom_call.1} parent=27 // pred_check
          %p440 = pneg %p123
        $region42: #{tpu_custom_call.1} parent=27 // pred_check_branch
          %442 = sbr.rel (%p440) target = $region44
        $region43: #{tpu_custom_call.1} parent=27 // pred_region
          %s443 = smul.u32 %s27, 2
          %s444 = sadd.s32 %s443, %s28
          %s446 = ssub.s32 512, 512
          %447 = vsyncadd %s436, %s446
          %s448 = smul.addr %s444, 4
          %s449 = smul.addr %s448, 128
          %s450 = scalar_lea.hbm %s2, %s449
          %s451 = sshll.u32 %s439, 4
          %s452 = int_to_ptr.vmem [resolvable:$true] %s451
          %457 = dma.vmem_to_hbm [thread:$0]  %s452, 512, %s450, %s436, 128, 128, 8
        $region44: #{tpu_custom_call.1} parent=27 // pred_fallthru
          _
      $region28: #{tpu_custom_call.1} parent=5 // pred_fallthru
        _
      %p458 = scmp.le.s32.totalorder 2, %s17
      // Predicated region
      $region45: #{tpu_custom_call.1} parent=5 // pred_check
        %p459 = pneg %p458
      $region46: #{tpu_custom_call.1} parent=5 // pred_check_branch
        %461 = sbr.rel (%p459) target = $region48
      $region47: #{tpu_custom_call.1} parent=5 // pred_region
        %s462 = ssub.s32 %s17, 2
        // Predicated region
        $region49: #{tpu_custom_call.1} parent=47 // pred_check
          %p463 = pneg %p129
        $region50: #{tpu_custom_call.1} parent=47 // pred_check_branch
          %465 = sbr.rel (%p463) target = $region52
        $region51: #{tpu_custom_call.1} parent=47 // pred_region
          %s466 = sand.u32 %s114, 1
          %s467 = scalar_lea.sflag [#allocation4], %s466
          %s468 = sand.u32 %s114, 1
          %s469 = smul.addr %s468, 32
          %s470 = scalar_lea.vmem [#allocation7], %s469
          %471 = dma.done %s467, 512
        $region52: #{tpu_custom_call.1} parent=47 // pred_fallthru
          _
      $region48: #{tpu_custom_call.1} parent=5 // pred_fallthru
        _
    $region6: #{tpu_custom_call.1} parent=1 // loop_footer
      %s21 = sadd.s32 1, %s17
    $region7: #{tpu_custom_call.1} parent=1 // loop_footer_branch
      %16 = sbr.rel target = $region3
    $region8: #{tpu_custom_call.1} parent=1 // loop_exit
      _
    %472 = vsyncpa [#allocation3], 1
    %s473 = scalar_lea.sflag [#allocation3], 1
    %474 = vsyncpa %s473, 1
    %475 = vsyncpa [#allocation6], 1
    %s476 = scalar_lea.sflag [#allocation6], 1
    %477 = vsyncpa %s476, 1
    %478 = vsyncpa [#allocation4], 1
    %s479 = scalar_lea.sflag [#allocation4], 1
    %480 = vsyncpa %s479, 1

</llo_original>
